<compile_context>
chip_gen: v7x
topology: tpu7x:2x2x1
jax: 0.10.0
libtpu: 0.0.40
codegen_flags: <defaults>
</compile_context>

<pallas_src>
import jax
import jax.numpy as jnp
from jax.experimental import pallas as pl
from jax.experimental.pallas import tpu as pltpu


# -----------------------------------------------------------------------------
# Kernel
# -----------------------------------------------------------------------------
def _fused_mlp_kernel(x_ref, w1_ref, w2_ref, wh_ref, b_ref, out_ref):
    """Fused policy+value MLP on one batch tile.

    x_ref  : [TB, obs_dim]          f32    (cast to bf16 in-kernel)
    w1_ref : [obs_dim, 2H]          bf16   ([w1 | vw1] concatenated on lanes)
    w2_ref : [2H, 2H]               bf16   (block-diag(w2, vw2))
    wh_ref : [2H, HEAD_W]           bf16   (wl top-left, vwo in column num_outputs)
    b_ref  : [1, 2H + 2H + HEAD_W]  f32    (b1|vb1 , b2|vb2 , bl|vbo|0...)
    out_ref: [TB, HEAD_W]           bf16   (logits in [:, :num_outputs], value in [:, num_outputs])
    """
    h2w = w1_ref.shape[1]       # 2H  (multiple of 128)
    head_w = wh_ref.shape[1]    # padded head width (>= 128, multiple of 128)

    # In-kernel cast: free VPU work, avoids a separate XLA cast pass over x.
    x = x_ref[...].astype(jnp.bfloat16)

    # Layer 1 (both towers, one MXU matmul): [TB, obs] @ [obs, 2H] -> f32 accum.
    z1 = jnp.dot(x, w1_ref[...], preferred_element_type=jnp.float32)
    # f32 bias add + tanh (v5e-safe), then produce the activation directly in bf16
    # so the [TB, 2H] intermediate costs half the store/load traffic.
    h1 = jnp.tanh(z1 + b_ref[:, 0:h2w]).astype(jnp.bfloat16)

    # Layer 2 (block-diagonal fusion): [TB, 2H] @ [2H, 2H].
    z2 = jnp.dot(h1, w2_ref[...], preferred_element_type=jnp.float32)
    h2 = jnp.tanh(z2 + b_ref[:, h2w:2 * h2w]).astype(jnp.bfloat16)

    # Fused heads: logits + value in one lane-dense matmul -> single unmasked store.
    z3 = jnp.dot(h2, wh_ref[...], preferred_element_type=jnp.float32)
    out_ref[...] = (z3 + b_ref[:, 2 * h2w:2 * h2w + head_w]).astype(out_ref.dtype)


# -----------------------------------------------------------------------------
# Parameter construction / packing
# -----------------------------------------------------------------------------
def init_params(key, obs_dim, hidden, num_outputs):
    """Deterministic synthetic parameters (shapes match TorchFC layers, [in, out])."""
    ks = jax.random.split(key, 6)

    def lin(kw, fan_in, fan_out):
        w = jax.random.normal(kw, (fan_in, fan_out), jnp.float32) * (1.0 / jnp.sqrt(fan_in))
        b = jnp.zeros((1, fan_out), jnp.float32)
        return w, b

    w1, b1 = lin(ks[0], obs_dim, hidden)
    w2, b2 = lin(ks[1], hidden, hidden)
    wl, bl = lin(ks[2], hidden, num_outputs)
    vw1, vb1 = lin(ks[3], obs_dim, hidden)
    vw2, vb2 = lin(ks[4], hidden, hidden)
    vwo, vbo = lin(ks[5], hidden, 1)

    return dict(
        w1=w1, b1=b1, w2=w2, b2=b2, wl=wl, bl=bl,
        vw1=vw1, vb1=vb1, vw2=vw2, vb2=vb2, vwo=vwo, vbo=vbo,
    )


def pack_params(params, num_outputs):
    """Fuse per-tower weights into lane-dense bf16 operands + one f32 bias vector."""
    H = params["w2"].shape[0]
    head_w = max(128, ((num_outputs + 1 + 127) // 128) * 128)

    # Layer 1: [obs, 2H]
    w1cat = jnp.concatenate([params["w1"], params["vw1"]], axis=1)

    # Layer 2: block-diagonal [2H, 2H]
    w2blk = jnp.zeros((2 * H, 2 * H), jnp.float32)
    w2blk = w2blk.at[:H, :H].set(params["w2"]).at[H:, H:].set(params["vw2"])

    # Heads: [2H, head_w]; logits cols [:num_outputs], value col num_outputs.
    whead = jnp.zeros((2 * H, head_w), jnp.float32)
    whead = whead.at[:H, :num_outputs].set(params["wl"])
    whead = whead.at[H:, num_outputs].set(params["vwo"][:, 0])

    # Packed biases: [1, 2H + 2H + head_w], kept in f32.
    b1cat = jnp.concatenate([params["b1"], params["vb1"]], axis=1)
    b2cat = jnp.concatenate([params["b2"], params["vb2"]], axis=1)
    bhead = jnp.zeros((1, head_w), jnp.float32)
    bhead = bhead.at[:, :num_outputs].set(params["bl"])
    bhead = bhead.at[:, num_outputs].set(params["vbo"][0, 0])
    bcat = jnp.concatenate([b1cat, b2cat, bhead], axis=1)

    return dict(
        w1cat=w1cat.astype(jnp.bfloat16),
        w2blk=w2blk.astype(jnp.bfloat16),
        whead=whead.astype(jnp.bfloat16),
        bcat=bcat.astype(jnp.float32),
        num_outputs=int(num_outputs),
        head_w=int(head_w),
    )


# -----------------------------------------------------------------------------
# Batch-tile selection
# -----------------------------------------------------------------------------
def _pick_batch_tile(B):
    """Large tiles (amortize ~0.35 us/step) but >= 2 grid steps for big B (v7x: 2 TCs).

    VMEM per tile at TB=4096 is ~(1 MiB x_f32 + 1 MiB out_bf16) x 2 buffers
    + ~230 KiB weights  << the 16/32 MiB scoped defaults on all generations.
    """
    if B <= 512:
        return B
    half = -(-B // 2)                       # cdiv(B, 2) -> guarantees >= 2 steps
    half_rounded = ((half + 511) // 512) * 512
    return min(4096, half_rounded)


# -----------------------------------------------------------------------------
# Wrapper (mirrors TorchModel.forward(...) + TorchModel.value_function())
# -----------------------------------------------------------------------------
def torch_model_forward(x, packed, out_dtype=jnp.bfloat16):
    B, obs_dim = x.shape
    num_outputs = packed["num_outputs"]
    head_w = packed["head_w"]
    h2w = packed["w1cat"].shape[1]   # 2H

    TB = _pick_batch_tile(B)
    grid = (pl.cdiv(B, TB),)

    out_bytes = jnp.dtype(out_dtype).itemsize
    flops = 2 * B * (obs_dim * h2w + h2w * h2w + h2w * head_w)
    transcendentals = 2 * B * h2w   # two tanh layers over 2H lanes each
    bytes_accessed = (
        B * obs_dim * 4                     # x read in f32 (cast happens in-kernel)
        + packed["w1cat"].size * 2
        + packed["w2blk"].size * 2
        + packed["whead"].size * 2
        + packed["bcat"].size * 4
        + B * head_w * out_bytes            # bf16 writeback by default
    )

    out = pl.pallas_call(
        _fused_mlp_kernel,
        out_shape=jax.ShapeDtypeStruct((B, head_w), out_dtype),
        grid=grid,
        in_specs=[
            pl.BlockSpec((TB, obs_dim), lambda i: (i, 0)),                # x: tiled on batch
            pl.BlockSpec(packed["w1cat"].shape, lambda i: (0, 0)),        # weights stay resident
            pl.BlockSpec(packed["w2blk"].shape, lambda i: (0, 0)),
            pl.BlockSpec(packed["whead"].shape, lambda i: (0, 0)),
            pl.BlockSpec(packed["bcat"].shape, lambda i: (0, 0)),
        ],
        out_specs=pl.BlockSpec((TB, head_w), lambda i: (i, 0)),
        compiler_params=pltpu.CompilerParams(
            dimension_semantics=("parallel",),   # shard batch grid across v7x's 2 TCs
        ),
        cost_estimate=pl.CostEstimate(
            flops=flops,
            transcendentals=transcendentals,
            bytes_accessed=bytes_accessed,
        ),
    )(
        x.astype(jnp.float32),
        packed["w1cat"], packed["w2blk"], packed["whead"], packed["bcat"],
    )

    # Lane-dense kernel output; cheap views at the boundary (accepted minor overhead).
    logits = out[:, :num_outputs]
    value = out[:, num_outputs]
    return logits, value


# -----------------------------------------------------------------------------
# References
# -----------------------------------------------------------------------------
def reference_forward_f32(x, p):
    """Original full-f32 semantics (PyTorch TorchFC math)."""
    h1 = jnp.tanh(x @ p["w1"] + p["b1"])
    h2 = jnp.tanh(h1 @ p["w2"] + p["b2"])
    logits = h2 @ p["wl"] + p["bl"]
    v1 = jnp.tanh(x @ p["vw1"] + p["vb1"])
    v2 = jnp.tanh(v1 @ p["vw2"] + p["vb2"])
    value = (v2 @ p["vwo"] + p["vbo"])[:, 0]
    return logits, value


def reference_forward_packed(x, packed, out_dtype=jnp.bfloat16):
    """Pure-JAX mirror of the kernel's fused bf16/f32 mixed-precision math."""
    h2w = packed["w1cat"].shape[1]
    head_w = packed["head_w"]
    no = packed["num_outputs"]
    b = packed["bcat"]
    xb = x.astype(jnp.float32).astype(jnp.bfloat16)
    h1 = jnp.tanh(jnp.dot(xb, packed["w1cat"],
                          preferred_element_type=jnp.float32)
                  + b[:, :h2w]).astype(jnp.bfloat16)
    h2 = jnp.tanh(jnp.dot(h1, packed["w2blk"],
                          preferred_element_type=jnp.float32)
                  + b[:, h2w:2 * h2w]).astype(jnp.bfloat16)
    out = (jnp.dot(h2, packed["whead"], preferred_element_type=jnp.float32)
           + b[:, 2 * h2w:2 * h2w + head_w]).astype(out_dtype)
    return out[:, :no], out[:, no]


# -----------------------------------------------------------------------------
# Smoke test
# -----------------------------------------------------------------------------
if __name__ == "__main__":
    B = 8            # batch
    OBS_DIM = 64     # flattened observation size
    HIDDEN = 128     # fcnet hidden size (2H = 256 fills a v6e/v7x MXU tile)
    NUM_OUTPUTS = 32 # action logits

    key = jax.random.PRNGKey(0)
    k_x, k_p = jax.random.split(key)
    x = jax.random.normal(k_x, (B, OBS_DIM), jnp.float32)

    params = init_params(k_p, OBS_DIM, HIDDEN, NUM_OUTPUTS)
    packed = pack_params(params, NUM_OUTPUTS)

    logits, value = torch_model_forward(x, packed)
    jax.block_until_ready((logits, value))

    # Tight check against the exact mixed-precision math the kernel performs.
    ref_logits_p, ref_value_p = reference_forward_packed(x, packed)
    # Looser check against the original f32 PyTorch-style semantics.
    ref_logits_f, ref_value_f = reference_forward_f32(x, params)

    lg = logits.astype(jnp.float32)
    vl = value.astype(jnp.float32)

    assert logits.shape == (B, NUM_OUTPUTS)
    assert value.shape == (B,)
    assert jnp.allclose(lg, ref_logits_p.astype(jnp.float32), atol=2e-2, rtol=2e-2)
    assert jnp.allclose(vl, ref_value_p.astype(jnp.float32), atol=2e-2, rtol=2e-2)
    assert jnp.allclose(lg, ref_logits_f, atol=6e-2, rtol=6e-2)
    assert jnp.allclose(vl, ref_value_f, atol=6e-2, rtol=6e-2)

    print("KERNEL_OK")
</pallas_src>

<mosaic_0001>
module attributes {stable_mosaic.version = 11 : i64} {
  func.func @_fused_mlp_kernel(%arg0: i32, %arg1: memref<8x64xf32, #tpu.memory_space<vmem>>, %arg2: memref<64x256xbf16, #tpu.memory_space<vmem>>, %arg3: memref<256x256xbf16, #tpu.memory_space<vmem>>, %arg4: memref<256x128xbf16, #tpu.memory_space<vmem>>, %arg5: memref<1x640xf32, #tpu.memory_space<vmem>>, %arg6: memref<8x128xbf16, #tpu.memory_space<vmem>>) attributes {dimension_semantics = [#tpu.dimension_semantics<parallel>], iteration_bounds = array<i64: 1>, scalar_prefetch = 0 : i64, scratch_operands = 0 : i64, tpu.core_type = #tpu.core_type<tc>, window_params = [{transform_indices = @transform_0, window_bounds = array<i64: 8, 64>}, {pipeline_mode = #tpu.pipeline_mode<synchronous>, transform_indices = @transform_1, window_bounds = array<i64: 64, 256>}, {pipeline_mode = #tpu.pipeline_mode<synchronous>, transform_indices = @transform_2, window_bounds = array<i64: 256, 256>}, {pipeline_mode = #tpu.pipeline_mode<synchronous>, transform_indices = @transform_3, window_bounds = array<i64: 256, 128>}, {pipeline_mode = #tpu.pipeline_mode<synchronous>, transform_indices = @transform_4, window_bounds = array<i64: 1, 640>}, {transform_indices = @transform_5, window_bounds = array<i64: 8, 128>}]} {
    %c0 = arith.constant 0 : index
    %c0_0 = arith.constant 0 : index
    %0 = vector.load %arg1[%c0, %c0_0] : memref<8x64xf32, #tpu.memory_space<vmem>>, vector<8x64xf32>
    %1 = arith.truncf %0 : vector<8x64xf32> to vector<8x64xbf16>
    %c0_1 = arith.constant 0 : index
    %c0_2 = arith.constant 0 : index
    %2 = vector.load %arg2[%c0_1, %c0_2] : memref<64x256xbf16, #tpu.memory_space<vmem>>, vector<64x256xbf16>
    %cst = arith.constant dense<0.000000e+00> : vector<8x256xf32>
    %3 = tpu.matmul %1, %2, %cst {dimension_numbers = #tpu.dot_dimension_numbers<[1], [0], [0], [1], [0, 0, 1, 1], [], []>} : vector<8x64xbf16>, vector<64x256xbf16>, vector<8x256xf32> -> vector<8x256xf32>
    %c0_3 = arith.constant 0 : index
    %c0_4 = arith.constant 0 : index
    %4 = vector.load %arg5[%c0_3, %c0_4] : memref<1x640xf32, #tpu.memory_space<vmem>>, vector<1x256xf32>
    %5 = vector.broadcast %4 : vector<1x256xf32> to vector<8x256xf32>
    %6 = arith.addf %3, %5 : vector<8x256xf32>
    %7 = math.tanh %6 : vector<8x256xf32>
    %8 = arith.truncf %7 : vector<8x256xf32> to vector<8x256xbf16>
    %c0_5 = arith.constant 0 : index
    %c0_6 = arith.constant 0 : index
    %9 = vector.load %arg3[%c0_5, %c0_6] : memref<256x256xbf16, #tpu.memory_space<vmem>>, vector<256x256xbf16>
    %cst_7 = arith.constant dense<0.000000e+00> : vector<8x256xf32>
    %10 = tpu.matmul %8, %9, %cst_7 {dimension_numbers = #tpu.dot_dimension_numbers<[1], [0], [0], [1], [0, 0, 1, 1], [], []>} : vector<8x256xbf16>, vector<256x256xbf16>, vector<8x256xf32> -> vector<8x256xf32>
    %c0_8 = arith.constant 0 : index
    %c256 = arith.constant 256 : index
    %11 = vector.load %arg5[%c0_8, %c256] : memref<1x640xf32, #tpu.memory_space<vmem>>, vector<1x256xf32>
    %12 = vector.broadcast %11 : vector<1x256xf32> to vector<8x256xf32>
    %13 = arith.addf %10, %12 : vector<8x256xf32>
    %14 = math.tanh %13 : vector<8x256xf32>
    %15 = arith.truncf %14 : vector<8x256xf32> to vector<8x256xbf16>
    %c0_9 = arith.constant 0 : index
    %c0_10 = arith.constant 0 : index
    %16 = vector.load %arg4[%c0_9, %c0_10] : memref<256x128xbf16, #tpu.memory_space<vmem>>, vector<256x128xbf16>
    %cst_11 = arith.constant dense<0.000000e+00> : vector<8x128xf32>
    %17 = tpu.matmul %15, %16, %cst_11 {dimension_numbers = #tpu.dot_dimension_numbers<[1], [0], [0], [1], [0, 0, 1, 1], [], []>} : vector<8x256xbf16>, vector<256x128xbf16>, vector<8x128xf32> -> vector<8x128xf32>
    %c0_12 = arith.constant 0 : index
    %c512 = arith.constant 512 : index
    %18 = vector.load %arg5[%c0_12, %c512] : memref<1x640xf32, #tpu.memory_space<vmem>>, vector<1x128xf32>
    %19 = vector.broadcast %18 : vector<1x128xf32> to vector<8x128xf32>
    %20 = arith.addf %17, %19 : vector<8x128xf32>
    %21 = arith.truncf %20 : vector<8x128xf32> to vector<8x128xbf16>
    %c0_13 = arith.constant 0 : index
    %c0_14 = arith.constant 0 : index
    %22 = vector.load %arg6[%c0_13, %c0_14] : memref<8x128xbf16, #tpu.memory_space<vmem>>, vector<8x128xbf16>
    tpu.vector_store %arg6[%c0_13, %c0_14], %21 {strides = array<i32>} : memref<8x128xbf16, #tpu.memory_space<vmem>>, vector<8x128xbf16>,
    return
  }
  func.func @transform_0(%arg0: i32) -> (i32, i32) {
    %c0_i32 = arith.constant 0 : i32
    %c0_i32_0 = arith.constant 0 : i32
    return %arg0, %c0_i32 : i32, i32
  }
  func.func @transform_1(%arg0: i32) -> (i32, i32) {
    %c0_i32 = arith.constant 0 : i32
    %c0_i32_0 = arith.constant 0 : i32
    %c0_i32_1 = arith.constant 0 : i32
    return %c0_i32, %c0_i32_0 : i32, i32
  }
  func.func @transform_2(%arg0: i32) -> (i32, i32) {
    %c0_i32 = arith.constant 0 : i32
    %c0_i32_0 = arith.constant 0 : i32
    %c0_i32_1 = arith.constant 0 : i32
    return %c0_i32, %c0_i32_0 : i32, i32
  }
  func.func @transform_3(%arg0: i32) -> (i32, i32) {
    %c0_i32 = arith.constant 0 : i32
    %c0_i32_0 = arith.constant 0 : i32
    %c0_i32_1 = arith.constant 0 : i32
    return %c0_i32, %c0_i32_0 : i32, i32
  }
  func.func @transform_4(%arg0: i32) -> (i32, i32) {
    %c0_i32 = arith.constant 0 : i32
    %c0_i32_0 = arith.constant 0 : i32
    %c0_i32_1 = arith.constant 0 : i32
    return %c0_i32, %c0_i32_0 : i32, i32
  }
  func.func @transform_5(%arg0: i32) -> (i32, i32) {
    %c0_i32 = arith.constant 0 : i32
    %c0_i32_0 = arith.constant 0 : i32
    return %arg0, %c0_i32 : i32, i32
  }
}

</mosaic_0001>

<llo_original>
// kernel: tpu_custom_call.1
$region0: #{tpu_custom_call.1}
  #allocation0 [shape = 'u32[]', space=smem, size = 0x4, offset = 0x4, fixed_abs, tag = 'smem constant byte address 0x4 - core index']
  #allocation1 [shape = 'u32[144,128]{1,0:T(1,128)}', space=vmem, size = 0x12000, scoped, tag = 'internal scratch']
  %s0 = inlined_call_operand.hbm [shape: f32[8,64], index: 0, kind: input, shape index: {}]
  %s1 = inlined_call_operand.hbm [shape: bf16[64,256], index: 1, kind: input, shape index: {}]
  %s2 = inlined_call_operand.hbm [shape: bf16[256,256], index: 2, kind: input, shape index: {}]
  %s3 = inlined_call_operand.hbm [shape: bf16[256,128], index: 3, kind: input, shape index: {}]
  %s4 = inlined_call_operand.vmem [shape: f32[1,640], index: 4, kind: input, shape index: {}]
  %s5 = inlined_call_operand.hbm [shape: bf16[8,128], index: 5, kind: output, shape index: {}]
  %s6 = sld [smem:[#allocation0]]
  $region46: #{tpu_custom_call.1} parent=0
    _
  %s8 = ssub.s32 1, %s6
  %s9 = scalar_select 0, %s8, %s6
  $region1: #{tpu_custom_call.1} parent=0
    #allocation2 [shape = 'u8[4096]{0}', space=vmem, size = 0x1000, scoped, tag = 'input window, operand 0, single buffered']
    #allocation3 [shape = 's32[1]{0}', space=sflag, size = 0x4, scoped, tag = 'scoped memory for tpu_custom_call.1']
    #allocation4 [shape = 's32[1]{0}', space=sflag, size = 0x4, scoped, tag = 'scoped memory for tpu_custom_call.1']
    #allocation5 [shape = 'u8[32768]{0}', space=vmem, size = 0x8000, scoped, tag = 'input window, operand 1, single buffered']
    #allocation6 [shape = 's32[1]{0}', space=sflag, size = 0x4, scoped, tag = 'scoped memory for tpu_custom_call.1']
    #allocation7 [shape = 'u8[131072]{0}', space=vmem, size = 0x20000, scoped, tag = 'input window, operand 2, single buffered']
    #allocation8 [shape = 'u8[65536]{0}', space=vmem, size = 0x10000, scoped, tag = 'input window, operand 3, single buffered']
    #allocation9 [shape = 's32[1]{0}', space=sflag, size = 0x4, scoped, tag = 'scoped memory for tpu_custom_call.1']
    #allocation10 [shape = 'u8[2048]{0}', space=vmem, size = 0x800, scoped, tag = 'output window, operand 0, single buffered']
    %10 = vsyncpa [#allocation3], 0
    %11 = vsyncpa [#allocation6], 0
    %12 = vsyncpa [#allocation9], 0
    %13 = vsyncpa [#allocation4], 0
    // Predicated region
    $region2: #{tpu_custom_call.1} parent=1 // pred_check
      _
    $region3: #{tpu_custom_call.1} parent=1 // pred_check_branch
      %15 = sbr.rel (0) target = $region5
    $region4: #{tpu_custom_call.1} parent=1 // pred_region
      %s17 = ssub.s32 128, 128
      %18 = vsyncadd [#allocation3], %s17
      %s20 = sshll.u32 [#allocation2], 4
      %s21 = int_to_ptr.vmem [resolvable:$true] %s20
      %23 = dma.hbm_to_vmem [thread:$0]  %s0, 128, %s21, [#allocation3]
    $region5: #{tpu_custom_call.1} parent=1 // pred_fallthru
      _
    // Predicated region
    $region6: #{tpu_custom_call.1} parent=1 // pred_check
      _
    $region7: #{tpu_custom_call.1} parent=1 // pred_check_branch
      %25 = sbr.rel (0) target = $region9
    $region8: #{tpu_custom_call.1} parent=1 // pred_region
      %s27 = ssub.s32 1024, 1024
      %28 = vsyncadd [#allocation6], %s27
      %s29 = sshll.u32 [#allocation5], 4
      %s30 = int_to_ptr.vmem [resolvable:$true] %s29
      %35 = dma.hbm_to_vmem [thread:$0]  %s1, 1024, %s30, [#allocation6], 128, 128, 8
    $region9: #{tpu_custom_call.1} parent=1 // pred_fallthru
      _
    // Predicated region
    $region10: #{tpu_custom_call.1} parent=1 // pred_check
      _
    $region11: #{tpu_custom_call.1} parent=1 // pred_check_branch
      %37 = sbr.rel (0) target = $region13
    $region12: #{tpu_custom_call.1} parent=1 // pred_region
      %s39 = ssub.s32 4096, 4096
      %40 = vsyncadd [#allocation6], %s39
      %s41 = sshll.u32 [#allocation7], 4
      %s42 = int_to_ptr.vmem [resolvable:$true] %s41
      %47 = dma.hbm_to_vmem [thread:$0]  %s2, 4096, %s42, [#allocation6], 128, 128, 8
    $region13: #{tpu_custom_call.1} parent=1 // pred_fallthru
      _
    // Predicated region
    $region14: #{tpu_custom_call.1} parent=1 // pred_check
      _
    $region15: #{tpu_custom_call.1} parent=1 // pred_check_branch
      %49 = sbr.rel (0) target = $region17
    $region16: #{tpu_custom_call.1} parent=1 // pred_region
      %s51 = ssub.s32 2048, 2048
      %52 = vsyncadd [#allocation9], %s51
      %s53 = sshll.u32 [#allocation8], 4
      %s54 = int_to_ptr.vmem [resolvable:$true] %s53
      %59 = dma.hbm_to_vmem [thread:$0]  %s3, 2048, %s54, [#allocation9], 64, 64, 4
    $region17: #{tpu_custom_call.1} parent=1 // pred_fallthru
      _
    // Predicated region
    $region18: #{tpu_custom_call.1} parent=1 // pred_check
      _
    $region19: #{tpu_custom_call.1} parent=1 // pred_check_branch
      %61 = sbr.rel (0) target = $region21
    $region20: #{tpu_custom_call.1} parent=1 // pred_region
      _
    $region21: #{tpu_custom_call.1} parent=1 // pred_fallthru
      _
    // Predicated region
    $region22: #{tpu_custom_call.1} parent=1 // pred_check
      _
    $region23: #{tpu_custom_call.1} parent=1 // pred_check_branch
      %63 = sbr.rel (0) target = $region25
    $region24: #{tpu_custom_call.1} parent=1 // pred_region
      %64 = dma.done [#allocation3], 128
    $region25: #{tpu_custom_call.1} parent=1 // pred_fallthru
      _
    // Predicated region
    $region26: #{tpu_custom_call.1} parent=1 // pred_check
      _
    $region27: #{tpu_custom_call.1} parent=1 // pred_check_branch
      %66 = sbr.rel (0) target = $region29
    $region28: #{tpu_custom_call.1} parent=1 // pred_region
      %67 = dma.done [#allocation6], 1024
    $region29: #{tpu_custom_call.1} parent=1 // pred_fallthru
      _
    // Predicated region
    $region30: #{tpu_custom_call.1} parent=1 // pred_check
      _
    $region31: #{tpu_custom_call.1} parent=1 // pred_check_branch
      %69 = sbr.rel (0) target = $region33
    $region32: #{tpu_custom_call.1} parent=1 // pred_region
      %70 = dma.done [#allocation6], 4096
    $region33: #{tpu_custom_call.1} parent=1 // pred_fallthru
      _
    // Predicated region
    $region34: #{tpu_custom_call.1} parent=1 // pred_check
      _
    $region35: #{tpu_custom_call.1} parent=1 // pred_check_branch
      %72 = sbr.rel (0) target = $region37
    $region36: #{tpu_custom_call.1} parent=1 // pred_region
      %73 = dma.done [#allocation9], 2048
    $region37: #{tpu_custom_call.1} parent=1 // pred_fallthru
      _
    %v75 = vld [vmem:[#allocation2] sm:$0xff]
    %v76 = vpack.c.bf16 %v75, %v75
    %v77 = vld [vmem:[#allocation5] sm:$0xff]
    %v78 = vld [vmem:[#allocation5 + $0x8] sm:$0xff]
    %v79 = vld [vmem:[#allocation5 + $0x10] sm:$0xff]
    %v80 = vld [vmem:[#allocation5 + $0x18] sm:$0xff]
    %v81 = vld [vmem:[#allocation5 + $0x20] sm:$0xff]
    %v82 = vld [vmem:[#allocation5 + $0x28] sm:$0xff]
    %v83 = vld [vmem:[#allocation5 + $0x30] sm:$0xff]
    %v84 = vld [vmem:[#allocation5 + $0x38] sm:$0xff]
    %v85 = vld [vmem:[%s4] sm:$0x3]
    %v87 = vlaneseq
    %v88 = vshrl.u32 %v87, 7
    %v89 = vsub.s32 0, %v88
    %v90 = vrot.slane %v85, %v89
    %v91 = vlaneseq
    %v92 = vshrl.u32 %v91, 7
    %v93 = vsub.s32 1, %v92
    %v94 = vrot.slane %v85, %v93
    %v105 = vunpack.c.l.b16 %v77
    %v106 = vunpack.c.h.b16 %v77
    %v107 = vunpack.c.l.b16 %v78
    %v108 = vunpack.c.h.b16 %v78
    %v109 = vunpack.c.l.b16 %v79
    %v110 = vunpack.c.h.b16 %v79
    %v111 = vunpack.c.l.b16 %v80
    %v112 = vunpack.c.h.b16 %v80
    %v113 = vunpack.c.l.b16 %v81
    %v114 = vunpack.c.h.b16 %v81
    %v115 = vunpack.c.l.b16 %v82
    %v116 = vunpack.c.h.b16 %v82
    %v117 = vunpack.c.l.b16 %v83
    %v118 = vunpack.c.h.b16 %v83
    %v119 = vunpack.c.l.b16 %v84
    %v120 = vunpack.c.h.b16 %v84
    %v121 = vpack.c.b16 %v107, %v105
    %v122 = vpack.c.b16 %v108, %v106
    %v123 = vpack.c.b16 %v111, %v109
    %v124 = vpack.c.b16 %v112, %v110
    %v125 = vpack.c.b16 %v115, %v113
    %v126 = vpack.c.b16 %v116, %v114
    %v127 = vpack.c.b16 %v119, %v117
    %v128 = vpack.c.b16 %v120, %v118
    %vm137 = vcmask 523264
    %v139 = vsel %vm137, %v76, 0
    %141 = vmatprep.subr.bf16.mxu0 %v122
    %142 = vmatpush1.bf16.msra.mxu0 %v121
    %143 = vmatprep.subr.bf16.mxu0 %v124
    %144 = vmatpush1.bf16.msra.mxu0 %v123
    %145 = vmatprep.subr.bf16.mxu0 %v126
    %146 = vmatpush1.bf16.msra.mxu0 %v125
    %147 = vmatprep.subr.bf16.mxu0 %v128
    %148 = vmatpush1.bf16.msra.mxu0 %v127
    %149 = vmatprep.subr.bf16.mxu0 0
    %150 = vmatpush1.bf16.msra.mxu0 0
    %151 = vmatprep.subr.bf16.mxu0 0
    %152 = vmatpush1.bf16.msra.mxu0 0
    %153 = vmatprep.subr.bf16.mxu0 0
    %154 = vmatpush1.bf16.msra.mxu0 0
    %155 = vmatprep.subr.bf16.mxu0 0
    %156 = vmatpush1.bf16.msra.mxu0 0
    %157 = vmatprep.subr.bf16.mxu0 0
    %158 = vmatpush1.bf16.msra.mxu0 0
    %159 = vmatprep.subr.bf16.mxu0 0
    %160 = vmatpush1.bf16.msra.mxu0 0
    %161 = vmatprep.subr.bf16.mxu0 0
    %162 = vmatpush1.bf16.msra.mxu0 0
    %163 = vmatprep.subr.bf16.mxu0 0
    %164 = vmatpush1.bf16.msra.mxu0 0
    %165 = vmatprep.subr.bf16.mxu0 0
    %166 = vmatpush1.bf16.msra.mxu0 0
    %167 = vmatprep.subr.bf16.mxu0 0
    %168 = vmatpush1.bf16.msra.mxu0 0
    %169 = vmatprep.subr.bf16.mxu0 0
    %170 = vmatpush1.bf16.msra.mxu0 0
    %171 = vmatprep.subr.bf16.mxu0 0
    %172 = vmatpush1.bf16.msra.mxu0 0
    %173 = vmatprep.mubr.bf16.mxu0 0
    %174 = vmatmul.mubr.bf16.gmra.mrb[0].mxu0 %v139
    %v175 = vpop.f32.mrb[0].mxu0
    %v176 = vadd.f32 %v90, %v175
    %v177 = vpop.f32.mrb[0].mxu0
    %v178 = vadd.f32 %v94, %v177
    %v179 = vpop.f32.mrb[0].mxu0
    %v180 = vpop.f32.mrb[0].mxu0
    %181 = vdwg.mxu0
    %v182 = vtanh.pop %v176
    %v183 = vtanh.pop %v178
    %v184 = vpack.c.bf16 %v182, %v182
    %v185 = vpack.c.bf16 %v183, %v183
    %v186 = vld [vmem:[#allocation7] sm:$0xff]
    %v187 = vld [vmem:[#allocation7 + $0x8] sm:$0xff]
    %v188 = vld [vmem:[#allocation7 + $0x10] sm:$0xff]
    %v189 = vld [vmem:[#allocation7 + $0x18] sm:$0xff]
    %v190 = vld [vmem:[#allocation7 + $0x20] sm:$0xff]
    %v191 = vld [vmem:[#allocation7 + $0x28] sm:$0xff]
    %v192 = vld [vmem:[#allocation7 + $0x30] sm:$0xff]
    %v193 = vld [vmem:[#allocation7 + $0x38] sm:$0xff]
    %v194 = vld [vmem:[#allocation7 + $0x40] sm:$0xff]
    %v195 = vld [vmem:[#allocation7 + $0x48] sm:$0xff]
    %v196 = vld [vmem:[#allocation7 + $0x50] sm:$0xff]
    %v197 = vld [vmem:[#allocation7 + $0x58] sm:$0xff]
    %v198 = vld [vmem:[#allocation7 + $0x60] sm:$0xff]
    %v199 = vld [vmem:[#allocation7 + $0x68] sm:$0xff]
    %v200 = vld [vmem:[#allocation7 + $0x70] sm:$0xff]
    %v201 = vld [vmem:[#allocation7 + $0x78] sm:$0xff]
    %v202 = vld [vmem:[#allocation7 + $0x80] sm:$0xff]
    %v203 = vld [vmem:[#allocation7 + $0x88] sm:$0xff]
    %v204 = vld [vmem:[#allocation7 + $0x90] sm:$0xff]
    %v205 = vld [vmem:[#allocation7 + $0x98] sm:$0xff]
    %v206 = vld [vmem:[#allocation7 + $0xa0] sm:$0xff]
    %v207 = vld [vmem:[#allocation7 + $0xa8] sm:$0xff]
    %v208 = vld [vmem:[#allocation7 + $0xb0] sm:$0xff]
    %v209 = vld [vmem:[#allocation7 + $0xb8] sm:$0xff]
    %v210 = vld [vmem:[#allocation7 + $0xc0] sm:$0xff]
    %v211 = vld [vmem:[#allocation7 + $0xc8] sm:$0xff]
    %v212 = vld [vmem:[#allocation7 + $0xd0] sm:$0xff]
    %v213 = vld [vmem:[#allocation7 + $0xd8] sm:$0xff]
    %v214 = vld [vmem:[#allocation7 + $0xe0] sm:$0xff]
    %v215 = vld [vmem:[#allocation7 + $0xe8] sm:$0xff]
    %v216 = vld [vmem:[#allocation7 + $0xf0] sm:$0xff]
    %v217 = vld [vmem:[#allocation7 + $0xf8] sm:$0xff]
    %v218 = vld [vmem:[%s4 + $0x2] sm:$0x3]
    %v220 = vlaneseq
    %v221 = vshrl.u32 %v220, 7
    %v222 = vsub.s32 0, %v221
    %v223 = vrot.slane %v218, %v222
    %v224 = vlaneseq
    %v225 = vshrl.u32 %v224, 7
    %v226 = vsub.s32 1, %v225
    %v227 = vrot.slane %v218, %v226
    %v262 = vunpack.c.l.b16 %v186
    %v263 = vunpack.c.h.b16 %v186
    %v264 = vunpack.c.l.b16 %v187
    %v265 = vunpack.c.h.b16 %v187
    %v266 = vunpack.c.l.b16 %v188
    %v267 = vunpack.c.h.b16 %v188
    %v268 = vunpack.c.l.b16 %v189
    %v269 = vunpack.c.h.b16 %v189
    %v270 = vunpack.c.l.b16 %v190
    %v271 = vunpack.c.h.b16 %v190
    %v272 = vunpack.c.l.b16 %v191
    %v273 = vunpack.c.h.b16 %v191
    %v274 = vunpack.c.l.b16 %v192
    %v275 = vunpack.c.h.b16 %v192
    %v276 = vunpack.c.l.b16 %v193
    %v277 = vunpack.c.h.b16 %v193
    %v278 = vunpack.c.l.b16 %v194
    %v279 = vunpack.c.h.b16 %v194
    %v280 = vunpack.c.l.b16 %v195
    %v281 = vunpack.c.h.b16 %v195
    %v282 = vunpack.c.l.b16 %v196
    %v283 = vunpack.c.h.b16 %v196
    %v284 = vunpack.c.l.b16 %v197
    %v285 = vunpack.c.h.b16 %v197
    %v286 = vunpack.c.l.b16 %v198
    %v287 = vunpack.c.h.b16 %v198
    %v288 = vunpack.c.l.b16 %v199
    %v289 = vunpack.c.h.b16 %v199
    %v290 = vunpack.c.l.b16 %v200
    %v291 = vunpack.c.h.b16 %v200
    %v292 = vunpack.c.l.b16 %v201
    %v293 = vunpack.c.h.b16 %v201
    %v294 = vunpack.c.l.b16 %v202
    %v295 = vunpack.c.h.b16 %v202
    %v296 = vunpack.c.l.b16 %v203
    %v297 = vunpack.c.h.b16 %v203
    %v298 = vunpack.c.l.b16 %v204
    %v299 = vunpack.c.h.b16 %v204
    %v300 = vunpack.c.l.b16 %v205
    %v301 = vunpack.c.h.b16 %v205
    %v302 = vunpack.c.l.b16 %v206
    %v303 = vunpack.c.h.b16 %v206
    %v304 = vunpack.c.l.b16 %v207
    %v305 = vunpack.c.h.b16 %v207
    %v306 = vunpack.c.l.b16 %v208
    %v307 = vunpack.c.h.b16 %v208
    %v308 = vunpack.c.l.b16 %v209
    %v309 = vunpack.c.h.b16 %v209
    %v310 = vunpack.c.l.b16 %v210
    %v311 = vunpack.c.h.b16 %v210
    %v312 = vunpack.c.l.b16 %v211
    %v313 = vunpack.c.h.b16 %v211
    %v314 = vunpack.c.l.b16 %v212
    %v315 = vunpack.c.h.b16 %v212
    %v316 = vunpack.c.l.b16 %v213
    %v317 = vunpack.c.h.b16 %v213
    %v318 = vunpack.c.l.b16 %v214
    %v319 = vunpack.c.h.b16 %v214
    %v320 = vunpack.c.l.b16 %v215
    %v321 = vunpack.c.h.b16 %v215
    %v322 = vunpack.c.l.b16 %v216
    %v323 = vunpack.c.h.b16 %v216
    %v324 = vunpack.c.l.b16 %v217
    %v325 = vunpack.c.h.b16 %v217
    %v326 = vpack.c.b16 %v264, %v262
    %v327 = vpack.c.b16 %v265, %v263
    %v328 = vpack.c.b16 %v268, %v266
    %v329 = vpack.c.b16 %v269, %v267
    %v330 = vpack.c.b16 %v272, %v270
    %v331 = vpack.c.b16 %v273, %v271
    %v332 = vpack.c.b16 %v276, %v274
    %v333 = vpack.c.b16 %v277, %v275
    %v334 = vpack.c.b16 %v280, %v278
    %v335 = vpack.c.b16 %v281, %v279
    %v336 = vpack.c.b16 %v284, %v282
    %v337 = vpack.c.b16 %v285, %v283
    %v338 = vpack.c.b16 %v288, %v286
    %v339 = vpack.c.b16 %v289, %v287
    %v340 = vpack.c.b16 %v292, %v290
    %v341 = vpack.c.b16 %v293, %v291
    %v342 = vpack.c.b16 %v296, %v294
    %v343 = vpack.c.b16 %v297, %v295
    %v344 = vpack.c.b16 %v300, %v298
    %v345 = vpack.c.b16 %v301, %v299
    %v346 = vpack.c.b16 %v304, %v302
    %v347 = vpack.c.b16 %v305, %v303
    %v348 = vpack.c.b16 %v308, %v306
    %v349 = vpack.c.b16 %v309, %v307
    %v350 = vpack.c.b16 %v312, %v310
    %v351 = vpack.c.b16 %v313, %v311
    %v352 = vpack.c.b16 %v316, %v314
    %v353 = vpack.c.b16 %v317, %v315
    %v354 = vpack.c.b16 %v320, %v318
    %v355 = vpack.c.b16 %v321, %v319
    %v356 = vpack.c.b16 %v324, %v322
    %v357 = vpack.c.b16 %v325, %v323
    %390 = vmatprep.subr.bf16.mxu0 %v327
    %391 = vmatpush1.bf16.msra.mxu0 %v326
    %392 = vmatprep.subr.bf16.mxu0 %v329
    %393 = vmatpush1.bf16.msra.mxu0 %v328
    %394 = vmatprep.subr.bf16.mxu0 %v331
    %395 = vmatpush1.bf16.msra.mxu0 %v330
    %396 = vmatprep.subr.bf16.mxu0 %v333
    %397 = vmatpush1.bf16.msra.mxu0 %v332
    %398 = vmatprep.subr.bf16.mxu0 %v335
    %399 = vmatpush1.bf16.msra.mxu0 %v334
    %400 = vmatprep.subr.bf16.mxu0 %v337
    %401 = vmatpush1.bf16.msra.mxu0 %v336
    %402 = vmatprep.subr.bf16.mxu0 %v339
    %403 = vmatpush1.bf16.msra.mxu0 %v338
    %404 = vmatprep.subr.bf16.mxu0 %v341
    %405 = vmatpush1.bf16.msra.mxu0 %v340
    %406 = vmatprep.subr.bf16.mxu0 %v343
    %407 = vmatpush1.bf16.msra.mxu0 %v342
    %408 = vmatprep.subr.bf16.mxu0 %v345
    %409 = vmatpush1.bf16.msra.mxu0 %v344
    %410 = vmatprep.subr.bf16.mxu0 %v347
    %411 = vmatpush1.bf16.msra.mxu0 %v346
    %412 = vmatprep.subr.bf16.mxu0 %v349
    %413 = vmatpush1.bf16.msra.mxu0 %v348
    %414 = vmatprep.subr.bf16.mxu0 %v351
    %415 = vmatpush1.bf16.msra.mxu0 %v350
    %416 = vmatprep.subr.bf16.mxu0 %v353
    %417 = vmatpush1.bf16.msra.mxu0 %v352
    %418 = vmatprep.subr.bf16.mxu0 %v355
    %419 = vmatpush1.bf16.msra.mxu0 %v354
    %420 = vmatprep.subr.bf16.mxu0 %v357
    %421 = vmatpush1.bf16.msra.mxu0 %v356
    %422 = vmatprep.mubr.bf16.mxu0 %v185
    %423 = vmatmul.mubr.bf16.gmra.mrb[0].mxu0 %v184
    %v424 = vpop.f32.mrb[0].mxu0
    %v425 = vadd.f32 %v223, %v424
    %v426 = vpop.f32.mrb[0].mxu0
    %v427 = vadd.f32 %v227, %v426
    %v428 = vpop.f32.mrb[0].mxu0
    %v429 = vpop.f32.mrb[0].mxu0
    %430 = vdwg.mxu0
    %v431 = vtanh.pop %v425
    %v432 = vtanh.pop %v427
    %v433 = vpack.c.bf16 %v431, %v431
    %v434 = vpack.c.bf16 %v432, %v432
    %v435 = vld [vmem:[#allocation8] sm:$0xf]
    %v436 = vld [vmem:[#allocation8 + $0x4] sm:$0xf]
    %v437 = vld [vmem:[#allocation8 + $0x8] sm:$0xf]
    %v438 = vld [vmem:[#allocation8 + $0xc] sm:$0xf]
    %v439 = vld [vmem:[#allocation8 + $0x10] sm:$0xf]
    %v440 = vld [vmem:[#allocation8 + $0x14] sm:$0xf]
    %v441 = vld [vmem:[#allocation8 + $0x18] sm:$0xf]
    %v442 = vld [vmem:[#allocation8 + $0x1c] sm:$0xf]
    %v443 = vld [vmem:[#allocation8 + $0x20] sm:$0xf]
    %v444 = vld [vmem:[#allocation8 + $0x24] sm:$0xf]
    %v445 = vld [vmem:[#allocation8 + $0x28] sm:$0xf]
    %v446 = vld [vmem:[#allocation8 + $0x2c] sm:$0xf]
    %v447 = vld [vmem:[#allocation8 + $0x30] sm:$0xf]
    %v448 = vld [vmem:[#allocation8 + $0x34] sm:$0xf]
    %v449 = vld [vmem:[#allocation8 + $0x38] sm:$0xf]
    %v450 = vld [vmem:[#allocation8 + $0x3c] sm:$0xf]
    %v451 = vld [vmem:[#allocation8 + $0x40] sm:$0xf]
    %v452 = vld [vmem:[#allocation8 + $0x44] sm:$0xf]
    %v453 = vld [vmem:[#allocation8 + $0x48] sm:$0xf]
    %v454 = vld [vmem:[#allocation8 + $0x4c] sm:$0xf]
    %v455 = vld [vmem:[#allocation8 + $0x50] sm:$0xf]
    %v456 = vld [vmem:[#allocation8 + $0x54] sm:$0xf]
    %v457 = vld [vmem:[#allocation8 + $0x58] sm:$0xf]
    %v458 = vld [vmem:[#allocation8 + $0x5c] sm:$0xf]
    %v459 = vld [vmem:[#allocation8 + $0x60] sm:$0xf]
    %v460 = vld [vmem:[#allocation8 + $0x64] sm:$0xf]
    %v461 = vld [vmem:[#allocation8 + $0x68] sm:$0xf]
    %v462 = vld [vmem:[#allocation8 + $0x6c] sm:$0xf]
    %v463 = vld [vmem:[#allocation8 + $0x70] sm:$0xf]
    %v464 = vld [vmem:[#allocation8 + $0x74] sm:$0xf]
    %v465 = vld [vmem:[#allocation8 + $0x78] sm:$0xf]
    %v466 = vld [vmem:[#allocation8 + $0x7c] sm:$0xf]
    %v467 = vld [vmem:[%s4 + $0x4] sm:$0x1]
    %v469 = vlaneseq
    %v470 = vshrl.u32 %v469, 7
    %v471 = vsub.s32 0, %v470
    %v472 = vrot.slane %v467, %v471
    %v506 = vunpack.c.l.b16 %v435
    %v507 = vunpack.c.l.b16 %v436
    %v508 = vunpack.c.l.b16 %v437
    %v509 = vunpack.c.l.b16 %v438
    %v510 = vunpack.c.l.b16 %v439
    %v511 = vunpack.c.l.b16 %v440
    %v512 = vunpack.c.l.b16 %v441
    %v513 = vunpack.c.l.b16 %v442
    %v514 = vunpack.c.l.b16 %v443
    %v515 = vunpack.c.l.b16 %v444
    %v516 = vunpack.c.l.b16 %v445
    %v517 = vunpack.c.l.b16 %v446
    %v518 = vunpack.c.l.b16 %v447
    %v519 = vunpack.c.l.b16 %v448
    %v520 = vunpack.c.l.b16 %v449
    %v521 = vunpack.c.l.b16 %v450
    %v522 = vunpack.c.l.b16 %v451
    %v523 = vunpack.c.l.b16 %v452
    %v524 = vunpack.c.l.b16 %v453
    %v525 = vunpack.c.l.b16 %v454
    %v526 = vunpack.c.l.b16 %v455
    %v527 = vunpack.c.l.b16 %v456
    %v528 = vunpack.c.l.b16 %v457
    %v529 = vunpack.c.l.b16 %v458
    %v530 = vunpack.c.l.b16 %v459
    %v531 = vunpack.c.l.b16 %v460
    %v532 = vunpack.c.l.b16 %v461
    %v533 = vunpack.c.l.b16 %v462
    %v534 = vunpack.c.l.b16 %v463
    %v535 = vunpack.c.l.b16 %v464
    %v536 = vunpack.c.l.b16 %v465
    %v537 = vunpack.c.l.b16 %v466
    %v538 = vpack.c.b16 %v507, %v506
    %v539 = vpack.c.b16 %v509, %v508
    %v540 = vpack.c.b16 %v511, %v510
    %v541 = vpack.c.b16 %v513, %v512
    %v542 = vpack.c.b16 %v515, %v514
    %v543 = vpack.c.b16 %v517, %v516
    %v544 = vpack.c.b16 %v519, %v518
    %v545 = vpack.c.b16 %v521, %v520
    %v546 = vpack.c.b16 %v523, %v522
    %v547 = vpack.c.b16 %v525, %v524
    %v548 = vpack.c.b16 %v527, %v526
    %v549 = vpack.c.b16 %v529, %v528
    %v550 = vpack.c.b16 %v531, %v530
    %v551 = vpack.c.b16 %v533, %v532
    %v552 = vpack.c.b16 %v535, %v534
    %v553 = vpack.c.b16 %v537, %v536
    %570 = vmatprep.subr.bf16.mxu0 0
    %571 = vmatpush1.bf16.msra.mxu0 %v538
    %572 = vmatprep.subr.bf16.mxu0 0
    %573 = vmatpush1.bf16.msra.mxu0 %v539
    %574 = vmatprep.subr.bf16.mxu0 0
    %575 = vmatpush1.bf16.msra.mxu0 %v540
    %576 = vmatprep.subr.bf16.mxu0 0
    %577 = vmatpush1.bf16.msra.mxu0 %v541
    %578 = vmatprep.subr.bf16.mxu0 0
    %579 = vmatpush1.bf16.msra.mxu0 %v542
    %580 = vmatprep.subr.bf16.mxu0 0
    %581 = vmatpush1.bf16.msra.mxu0 %v543
    %582 = vmatprep.subr.bf16.mxu0 0
    %583 = vmatpush1.bf16.msra.mxu0 %v544
    %584 = vmatprep.subr.bf16.mxu0 0
    %585 = vmatpush1.bf16.msra.mxu0 %v545
    %586 = vmatprep.subr.bf16.mxu0 0
    %587 = vmatpush1.bf16.msra.mxu0 %v546
    %588 = vmatprep.subr.bf16.mxu0 0
    %589 = vmatpush1.bf16.msra.mxu0 %v547
    %590 = vmatprep.subr.bf16.mxu0 0
    %591 = vmatpush1.bf16.msra.mxu0 %v548
    %592 = vmatprep.subr.bf16.mxu0 0
    %593 = vmatpush1.bf16.msra.mxu0 %v549
    %594 = vmatprep.subr.bf16.mxu0 0
    %595 = vmatpush1.bf16.msra.mxu0 %v550
    %596 = vmatprep.subr.bf16.mxu0 0
    %597 = vmatpush1.bf16.msra.mxu0 %v551
    %598 = vmatprep.subr.bf16.mxu0 0
    %599 = vmatpush1.bf16.msra.mxu0 %v552
    %600 = vmatprep.subr.bf16.mxu0 0
    %601 = vmatpush1.bf16.msra.mxu0 %v553
    %602 = vmatprep.mubr.bf16.mxu0 %v434
    %603 = vmatmul.mubr.bf16.gmra.mrb[0].mxu0 %v433
    %v604 = vpop.f32.mrb[0].mxu0
    %v605 = vadd.f32 %v472, %v604
    %v606 = vpop.f32.mrb[0].mxu0
    %v607 = vpop.f32.mrb[0].mxu0
    %v608 = vpop.f32.mrb[0].mxu0
    %609 = vdwg.mxu0
    %v610 = vpack.c.bf16 %v605, %v605
    %611 = vst [vmem:[#allocation10] sm:$0xf] %v610
    // Predicated region
    $region38: #{tpu_custom_call.1} parent=1 // pred_check
      _
    $region39: #{tpu_custom_call.1} parent=1 // pred_check_branch
      %613 = sbr.rel (0) target = $region41
    $region40: #{tpu_custom_call.1} parent=1 // pred_region
      %s615 = ssub.s32 64, 64
      %616 = vsyncadd [#allocation4], %s615
      %s618 = sshll.u32 [#allocation10], 4
      %s619 = int_to_ptr.vmem [resolvable:$true] %s618
      %621 = dma.vmem_to_hbm [thread:$0]  %s619, 64, %s5, [#allocation4]
    $region41: #{tpu_custom_call.1} parent=1 // pred_fallthru
      _
    // Predicated region
    $region42: #{tpu_custom_call.1} parent=1 // pred_check
      _
    $region43: #{tpu_custom_call.1} parent=1 // pred_check_branch
      %623 = sbr.rel (0) target = $region45
    $region44: #{tpu_custom_call.1} parent=1 // pred_region
      %624 = dma.done [#allocation4], 64
    $region45: #{tpu_custom_call.1} parent=1 // pred_fallthru
      _
    %625 = vsyncpa [#allocation3], 1
    %626 = vsyncpa [#allocation6], 1
    %627 = vsyncpa [#allocation9], 1
    %628 = vsyncpa [#allocation4], 1

</llo_original>
